<compile_context>
chip_gen: v7x
topology: tpu7x:2x2x1
jax: 0.10.0
libtpu: 0.0.40
codegen_flags: <defaults>
</compile_context>

<pallas_src>
import functools

import jax
import jax.numpy as jnp
from jax.experimental import pallas as pl
from jax.experimental.pallas import tpu as pltpu


def _round_up(x, m):
    return ((x + m - 1) // m) * m


def _stacked_gru_kernel(x_ref, h_ref, w_ref, b_ref, out_ref, cat_ref,
                        *, h_pad, d_pad):
    """One layer of the stacked GRU per grid step (grid axis = layer).

    cat_ref is a VMEM scratch of shape (B_pad, D_pad + H_pad) holding the
    concatenated [layer_input | h_prev]; the layer_input part carries across
    grid iterations (layer l+1 consumes layer l's output without touching HBM).
    """
    layer = pl.program_id(0)

    # Layer 0: stage the external input into the x-portion of the concat buffer.
    @pl.when(layer == 0)
    def _():
        cat_ref[:, 0:d_pad] = x_ref[...]

    h_prev = h_ref[0]                                   # (B_pad, H_pad)
    cat_ref[:, d_pad:d_pad + h_pad] = h_prev            # h-portion, per layer

    # Single fused matmul: [x, h] @ W_cat  -> (B_pad, 4*H_pad), f32 accumulation.
    g = jnp.dot(cat_ref[...], w_ref[0], preferred_element_type=jnp.float32)
    g = g + b_ref[0].astype(jnp.float32)                # (1, 4H) broadcast over B

    H = h_pad
    r = jax.nn.sigmoid(g[:, 0:H])
    z = jax.nn.sigmoid(g[:, H:2 * H])
    # g[:, 2H:3H] = x@Wih_n + b_in ; g[:, 3H:4H] = h@Whh_n + b_hn (b_hn inside r*)
    n = jnp.tanh(g[:, 2 * H:3 * H] + r * g[:, 3 * H:4 * H])
    h_new = (1.0 - z) * n + z * h_prev.astype(jnp.float32)

    out_ref[0] = h_new.astype(out_ref.dtype)

    # Stage this layer's output as the next layer's input (dropout = identity).
    cat_ref[:, 0:h_pad] = h_new.astype(cat_ref.dtype)
    if d_pad > h_pad:
        # Clear stale layer-0 input columns beyond the hidden width.
        cat_ref[:, h_pad:d_pad] = jnp.zeros(
            (cat_ref.shape[0], d_pad - h_pad), cat_ref.dtype)


def pack_stacked_gru_params(params, d_pad, h_pad):
    """Pack per-layer (w_ih, w_hh, b_ih, b_hh) into stacked fused weights.

    Returns:
      w_stacked: (L, d_pad + h_pad, 4*h_pad)  column blocks [r | z | i_n | h_n]
      b_stacked: (L, 1, 4*h_pad)              (b_ir+b_hr, b_iz+b_hz, b_in, b_hn)
    """
    H = params[0][1].shape[0]
    w_blocks, b_blocks = [], []
    for (w_ih, w_hh, b_ih, b_hh) in params:
        in_l = w_ih.shape[0]
        dt = w_ih.dtype

        def pcols(w):  # pad a gate column block H -> h_pad
            return jnp.pad(w, ((0, 0), (0, h_pad - H)))

        wih_r, wih_z, wih_n = w_ih[:, 0:H], w_ih[:, H:2 * H], w_ih[:, 2 * H:3 * H]
        whh_r, whh_z, whh_n = w_hh[:, 0:H], w_hh[:, H:2 * H], w_hh[:, 2 * H:3 * H]

        top = jnp.concatenate(
            [pcols(wih_r), pcols(wih_z), pcols(wih_n),
             jnp.zeros((in_l, h_pad), dt)], axis=1)          # (in_l, 4*h_pad)
        top = jnp.pad(top, ((0, d_pad - in_l), (0, 0)))      # (d_pad, 4*h_pad)
        bot = jnp.concatenate(
            [pcols(whh_r), pcols(whh_z),
             jnp.zeros((H, h_pad), dt), pcols(whh_n)], axis=1)
        bot = jnp.pad(bot, ((0, h_pad - H), (0, 0)))         # (h_pad, 4*h_pad)
        w_blocks.append(jnp.concatenate([top, bot], axis=0))

        bi = b_ih.reshape(-1)
        bh = b_hh.reshape(-1)

        def pvec(v):
            return jnp.pad(v, (0, h_pad - H))

        b_cat = jnp.concatenate(
            [pvec(bi[0:H] + bh[0:H]),        # r biases pre-summed
             pvec(bi[H:2 * H] + bh[H:2 * H]),  # z biases pre-summed
             pvec(bi[2 * H:3 * H]),          # b_in (stays outside r*)
             pvec(bh[2 * H:3 * H])],         # b_hn (stays inside r*)
            axis=0)
        b_blocks.append(b_cat.reshape(1, 4 * h_pad))

    return jnp.stack(w_blocks, axis=0), jnp.stack(b_blocks, axis=0)


def stacked_gru_forward(x, hidden, params):
    """Mirror of StackedGRU.forward (inference: dropout = identity).

    x      : (B, input_size)
    hidden : (num_layers, B, hidden_size) or None
    params : list of (w_ih (In_l,3H), w_hh (H,3H), b_ih (1,3H), b_hh (1,3H))
    returns (output, h_1) with output (B, H), h_1 (num_layers, B, H)
    """
    B, in_size = x.shape
    L = len(params)
    H = params[0][1].shape[0]

    h_pad = _round_up(H, 128)
    d_pad = max(_round_up(in_size, 128), h_pad)
    b_pad = _round_up(max(B, 8), 8)

    x_pad = jnp.pad(x, ((0, b_pad - B), (0, d_pad - in_size)))
    if hidden is None:
        hidden_pad = jnp.zeros((L, b_pad, h_pad), x.dtype)
    else:
        hidden_pad = jnp.pad(hidden,
                             ((0, 0), (0, b_pad - B), (0, h_pad - H)))

    w_stacked, b_stacked = pack_stacked_gru_params(params, d_pad, h_pad)

    kernel = functools.partial(_stacked_gru_kernel, h_pad=h_pad, d_pad=d_pad)

    out_pad = pl.pallas_call(
        kernel,
        out_shape=jax.ShapeDtypeStruct((L, b_pad, h_pad), x.dtype),
        grid_spec=pltpu.PrefetchScalarGridSpec(
            num_scalar_prefetch=0,
            grid=(L,),
            in_specs=[
                # external input: resident across all layers (constant block idx)
                pl.BlockSpec((b_pad, d_pad), lambda l: (0, 0)),
                # per-layer initial hidden
                pl.BlockSpec((1, b_pad, h_pad), lambda l: (l, 0, 0)),
                # per-layer fused weights (pipelined / prefetched per layer)
                pl.BlockSpec((1, d_pad + h_pad, 4 * h_pad), lambda l: (l, 0, 0)),
                # per-layer fused bias
                pl.BlockSpec((1, 1, 4 * h_pad), lambda l: (l, 0, 0)),
            ],
            out_specs=pl.BlockSpec((1, b_pad, h_pad), lambda l: (l, 0, 0)),
            scratch_shapes=[pltpu.VMEM((b_pad, d_pad + h_pad), x.dtype)],
        ),
        compiler_params=pltpu.CompilerParams(
            dimension_semantics=("arbitrary",)),
    )(x_pad, hidden_pad, w_stacked, b_stacked)

    h_1 = out_pad[:, :B, :H]
    return h_1[-1], h_1


def init_stacked_gru_params(key, input_size, hidden_size, num_layers,
                            dtype=jnp.float32):
    """Deterministic init matching nn.GRUCell shapes, U(-1/sqrt(H), 1/sqrt(H)).

    PyTorch stores weight_ih as (3H, In); we store the transpose (In, 3H) so the
    kernel does x @ W on the MXU.  Gate order (r, z, n) matches torch.
    """
    params = []
    bound = 1.0 / (hidden_size ** 0.5)
    in_sz = input_size
    for _ in range(num_layers):
        key, k1, k2, k3, k4 = jax.random.split(key, 5)
        w_ih = jax.random.uniform(k1, (in_sz, 3 * hidden_size), dtype,
                                  minval=-bound, maxval=bound)
        w_hh = jax.random.uniform(k2, (hidden_size, 3 * hidden_size), dtype,
                                  minval=-bound, maxval=bound)
        b_ih = jax.random.uniform(k3, (1, 3 * hidden_size), dtype,
                                  minval=-bound, maxval=bound)
        b_hh = jax.random.uniform(k4, (1, 3 * hidden_size), dtype,
                                  minval=-bound, maxval=bound)
        params.append((w_ih, w_hh, b_ih, b_hh))
        in_sz = hidden_size
    return params


def _reference_stacked_gru(x, hidden, params):
    """Pure-JAX reference with torch.nn.GRUCell semantics."""
    h_1 = []
    inp = x
    for i, (w_ih, w_hh, b_ih, b_hh) in enumerate(params):
        H = w_hh.shape[0]
        h = hidden[i] if hidden is not None else jnp.zeros(
            (inp.shape[0], H), inp.dtype)
        gi = inp @ w_ih + b_ih
        gh = h @ w_hh + b_hh
        r = jax.nn.sigmoid(gi[:, 0:H] + gh[:, 0:H])
        z = jax.nn.sigmoid(gi[:, H:2 * H] + gh[:, H:2 * H])
        n = jnp.tanh(gi[:, 2 * H:3 * H] + r * gh[:, 2 * H:3 * H])
        h_new = (1.0 - z) * n + z * h
        inp = h_new  # dropout(p) in eval mode is identity
        h_1.append(h_new)
    return inp, jnp.stack(h_1, axis=0)


if __name__ == "__main__":
    B = 2
    INPUT_SIZE = 16
    HIDDEN_SIZE = 32
    NUM_LAYERS = 3

    key = jax.random.PRNGKey(0)
    key, kx, kh, kp = jax.random.split(key, 4)

    x = jax.random.normal(kx, (B, INPUT_SIZE), jnp.float32)
    hidden = jax.random.normal(kh, (NUM_LAYERS, B, HIDDEN_SIZE), jnp.float32)
    params = init_stacked_gru_params(kp, INPUT_SIZE, HIDDEN_SIZE, NUM_LAYERS)

    out, h_1 = stacked_gru_forward(x, hidden, params)
    jax.block_until_ready((out, h_1))

    assert out.shape == (B, HIDDEN_SIZE)
    assert h_1.shape == (NUM_LAYERS, B, HIDDEN_SIZE)
    assert bool(jnp.allclose(out, h_1[-1]))

    ref_out, ref_h1 = _reference_stacked_gru(x, hidden, params)
    assert bool(jnp.allclose(out, ref_out, atol=1e-5, rtol=1e-5))
    assert bool(jnp.allclose(h_1, ref_h1, atol=1e-5, rtol=1e-5))

    # hidden=None path (GRUCell default zero hidden)
    out0, h_10 = stacked_gru_forward(x, None, params)
    ref_out0, ref_h10 = _reference_stacked_gru(x, None, params)
    jax.block_until_ready((out0, h_10))
    assert bool(jnp.allclose(out0, ref_out0, atol=1e-5, rtol=1e-5))
    assert bool(jnp.allclose(h_10, ref_h10, atol=1e-5, rtol=1e-5))

    print("KERNEL_OK")
</pallas_src>

<mosaic_0001>
module attributes {stable_mosaic.version = 11 : i64} {
  func.func @_stacked_gru_kernel(%arg0: i32, %arg1: memref<8x128xf32, #tpu.memory_space<vmem>>, %arg2: memref<1x8x128xf32, #tpu.memory_space<vmem>>, %arg3: memref<1x256x512xf32, #tpu.memory_space<vmem>>, %arg4: memref<1x1x512xf32, #tpu.memory_space<vmem>>, %arg5: memref<1x8x128xf32, #tpu.memory_space<vmem>>, %arg6: memref<8x256xf32, #tpu.memory_space<vmem>>) attributes {dimension_semantics = [#tpu.dimension_semantics<arbitrary>], iteration_bounds = array<i64: 3>, scalar_prefetch = 0 : i64, scratch_operands = 1 : i64, tpu.core_type = #tpu.core_type<tc>, window_params = [{pipeline_mode = #tpu.pipeline_mode<synchronous>, transform_indices = @transform_0, window_bounds = array<i64: 8, 128>}, {transform_indices = @transform_1, window_bounds = array<i64: 1, 8, 128>}, {transform_indices = @transform_2, window_bounds = array<i64: 1, 256, 512>}, {transform_indices = @transform_3, window_bounds = array<i64: 1, 1, 512>}, {transform_indices = @transform_4, window_bounds = array<i64: 1, 8, 128>}]} {
    %c0_i32 = arith.constant 0 : i32
    %0 = arith.cmpi eq, %arg0, %c0_i32 : i32
    %1 = arith.extui %0 : i1 to i32
    %c0_i32_0 = arith.constant 0 : i32
    %2 = arith.cmpi ne, %1, %c0_i32_0 : i32
    scf.if %2 {
      %c0_20 = arith.constant 0 : index
      %c0_21 = arith.constant 0 : index
      %40 = vector.load %arg1[%c0_20, %c0_21] : memref<8x128xf32, #tpu.memory_space<vmem>>, vector<8x128xf32>
      %c0_22 = arith.constant 0 : index
      %c0_23 = arith.constant 0 : index
      %41 = vector.load %arg6[%c0_22, %c0_23] : memref<8x256xf32, #tpu.memory_space<vmem>>, vector<8x128xf32>
      tpu.vector_store %arg6[%c0_22, %c0_23], %40 {strides = array<i32>} : memref<8x256xf32, #tpu.memory_space<vmem>>, vector<8x128xf32>,
    } else {
    }
    %c0 = arith.constant 0 : index
    %c0_1 = arith.constant 0 : index
    %c0_2 = arith.constant 0 : index
    %3 = vector.load %arg2[%c0, %c0_1, %c0_2] : memref<1x8x128xf32, #tpu.memory_space<vmem>>, vector<1x8x128xf32>
    %4 = vector.shape_cast %3 : vector<1x8x128xf32> to vector<8x128xf32>
    %c0_3 = arith.constant 0 : index
    %c128 = arith.constant 128 : index
    %5 = vector.load %arg6[%c0_3, %c128] : memref<8x256xf32, #tpu.memory_space<vmem>>, vector<8x128xf32>
    tpu.vector_store %arg6[%c0_3, %c128], %4 {strides = array<i32>} : memref<8x256xf32, #tpu.memory_space<vmem>>, vector<8x128xf32>,
    %c0_4 = arith.constant 0 : index
    %c0_5 = arith.constant 0 : index
    %6 = vector.load %arg6[%c0_4, %c0_5] : memref<8x256xf32, #tpu.memory_space<vmem>>, vector<8x256xf32>
    %c0_6 = arith.constant 0 : index
    %c0_7 = arith.constant 0 : index
    %c0_8 = arith.constant 0 : index
    %7 = vector.load %arg3[%c0_6, %c0_7, %c0_8] : memref<1x256x512xf32, #tpu.memory_space<vmem>>, vector<1x256x512xf32>
    %8 = vector.shape_cast %7 : vector<1x256x512xf32> to vector<256x512xf32>
    %cst = arith.constant dense<0.000000e+00> : vector<8x512xf32>
    %9 = tpu.matmul %6, %8, %cst {dimension_numbers = #tpu.dot_dimension_numbers<[1], [0], [0], [1], [0, 0, 1, 1], [], []>} : vector<8x256xf32>, vector<256x512xf32>, vector<8x512xf32> -> vector<8x512xf32>
    %c0_9 = arith.constant 0 : index
    %c0_10 = arith.constant 0 : index
    %c0_11 = arith.constant 0 : index
    %10 = vector.load %arg4[%c0_9, %c0_10, %c0_11] : memref<1x1x512xf32, #tpu.memory_space<vmem>>, vector<1x1x512xf32>
    %11 = vector.shape_cast %10 : vector<1x1x512xf32> to vector<1x512xf32>
    %12 = vector.broadcast %11 : vector<1x512xf32> to vector<8x512xf32>
    %13 = arith.addf %9, %12 : vector<8x512xf32>
    %14 = vector.extract_strided_slice %13 {offsets = [0, 0], sizes = [8, 128], strides = [1, 1]} : vector<8x512xf32> to vector<8x128xf32>
    %15 = arith.negf %14 : vector<8x128xf32>
    %16 = math.exp %15 : vector<8x128xf32>
    %cst_12 = arith.constant 1.000000e+00 : f32
    %17 = vector.broadcast %cst_12 : f32 to vector<8x128xf32>
    %18 = arith.addf %17, %16 : vector<8x128xf32>
    %19 = arith.divf %17, %18 : vector<8x128xf32>
    %20 = vector.extract_strided_slice %13 {offsets = [0, 128], sizes = [8, 128], strides = [1, 1]} : vector<8x512xf32> to vector<8x128xf32>
    %21 = arith.negf %20 : vector<8x128xf32>
    %22 = math.exp %21 : vector<8x128xf32>
    %cst_13 = arith.constant 1.000000e+00 : f32
    %23 = vector.broadcast %cst_13 : f32 to vector<8x128xf32>
    %24 = arith.addf %23, %22 : vector<8x128xf32>
    %25 = arith.divf %23, %24 : vector<8x128xf32>
    %26 = vector.extract_strided_slice %13 {offsets = [0, 256], sizes = [8, 128], strides = [1, 1]} : vector<8x512xf32> to vector<8x128xf32>
    %27 = vector.extract_strided_slice %13 {offsets = [0, 384], sizes = [8, 128], strides = [1, 1]} : vector<8x512xf32> to vector<8x128xf32>
    %28 = arith.mulf %19, %27 : vector<8x128xf32>
    %29 = arith.addf %26, %28 : vector<8x128xf32>
    %30 = math.tanh %29 : vector<8x128xf32>
    %cst_14 = arith.constant 1.000000e+00 : f32
    %31 = vector.broadcast %cst_14 : f32 to vector<8x128xf32>
    %32 = arith.subf %31, %25 : vector<8x128xf32>
    %33 = arith.mulf %32, %30 : vector<8x128xf32>
    %34 = arith.mulf %25, %4 : vector<8x128xf32>
    %35 = arith.addf %33, %34 : vector<8x128xf32>
    %c0_15 = arith.constant 0 : index
    %c0_16 = arith.constant 0 : index
    %c0_17 = arith.constant 0 : index
    %36 = vector.load %arg5[%c0_15, %c0_16, %c0_17] : memref<1x8x128xf32, #tpu.memory_space<vmem>>, vector<1x8x128xf32>
    %37 = vector.shape_cast %36 : vector<1x8x128xf32> to vector<8x128xf32>
    %38 = vector.shape_cast %35 : vector<8x128xf32> to vector<1x8x128xf32>
    tpu.vector_store %arg5[%c0_15, %c0_16, %c0_17], %38 {strides = array<i32>} : memref<1x8x128xf32, #tpu.memory_space<vmem>>, vector<1x8x128xf32>,
    %c0_18 = arith.constant 0 : index
    %c0_19 = arith.constant 0 : index
    %39 = vector.load %arg6[%c0_18, %c0_19] : memref<8x256xf32, #tpu.memory_space<vmem>>, vector<8x128xf32>
    tpu.vector_store %arg6[%c0_18, %c0_19], %35 {strides = array<i32>} : memref<8x256xf32, #tpu.memory_space<vmem>>, vector<8x128xf32>,
    return
  }
  func.func @transform_0(%arg0: i32) -> (i32, i32) {
    %c0_i32 = arith.constant 0 : i32
    %c0_i32_0 = arith.constant 0 : i32
    %c0_i32_1 = arith.constant 0 : i32
    return %c0_i32, %c0_i32_0 : i32, i32
  }
  func.func @transform_1(%arg0: i32) -> (i32, i32, i32) {
    %c0_i32 = arith.constant 0 : i32
    %c0_i32_0 = arith.constant 0 : i32
    %c0_i32_1 = arith.constant 0 : i32
    return %arg0, %c0_i32, %c0_i32_0 : i32, i32, i32
  }
  func.func @transform_2(%arg0: i32) -> (i32, i32, i32) {
    %c0_i32 = arith.constant 0 : i32
    %c0_i32_0 = arith.constant 0 : i32
    %c0_i32_1 = arith.constant 0 : i32
    return %arg0, %c0_i32, %c0_i32_0 : i32, i32, i32
  }
  func.func @transform_3(%arg0: i32) -> (i32, i32, i32) {
    %c0_i32 = arith.constant 0 : i32
    %c0_i32_0 = arith.constant 0 : i32
    %c0_i32_1 = arith.constant 0 : i32
    return %arg0, %c0_i32, %c0_i32_0 : i32, i32, i32
  }
  func.func @transform_4(%arg0: i32) -> (i32, i32, i32) {
    %c0_i32 = arith.constant 0 : i32
    %c0_i32_0 = arith.constant 0 : i32
    %c0_i32_1 = arith.constant 0 : i32
    return %arg0, %c0_i32, %c0_i32_0 : i32, i32, i32
  }
}

</mosaic_0001>

<llo_original>
// kernel: tpu_custom_call.1
$region0: #{tpu_custom_call.1}
  #allocation0 [shape = 'u32[]', space=smem, size = 0x4, offset = 0x4, fixed_abs, tag = 'smem constant byte address 0x4 - core index']
  #allocation1 [shape = 'u32[144,128]{1,0:T(1,128)}', space=vmem, size = 0x12000, scoped, tag = 'internal scratch']
  #allocation2 [shape = 'f32[8,256]{1,0:T(8,128)}', space=vmem, size = 0x2000, scoped, tag = 'scratch operand']
  %s0 = inlined_call_operand.hbm [shape: f32[8,128], index: 0, kind: input, shape index: {}]
  %s1 = inlined_call_operand.hbm [shape: f32[3,8,128], index: 1, kind: input, shape index: {}]
  %s2 = inlined_call_operand.hbm [shape: f32[3,256,512], index: 2, kind: input, shape index: {}]
  %s3 = inlined_call_operand.hbm [shape: f32[3,1,512], index: 3, kind: input, shape index: {}]
  %s4 = inlined_call_operand.hbm [shape: f32[3,8,128], index: 4, kind: output, shape index: {}]
  %s5 = sld [smem:[#allocation0]]
  $region69: #{tpu_custom_call.1} parent=0
    _
  %s7 = ssub.s32 1, %s5
  %s8 = scalar_select 0, %s7, %s5
  $region1: #{tpu_custom_call.1} parent=0
    #allocation3 [shape = 'u8[4096]{0}', space=vmem, size = 0x1000, scoped, tag = 'input window, operand 0, single buffered']
    #allocation4 [shape = 's32[2]{0}', space=sflag, size = 0x8, scoped, tag = 'scoped memory for tpu_custom_call.1']
    #allocation5 [shape = 's32[2]{0}', space=sflag, size = 0x8, scoped, tag = 'scoped memory for tpu_custom_call.1']
    #allocation6 [shape = 'u8[8192]{0}', space=vmem, size = 0x2000, scoped, tag = 'input window, operand 1']
    #allocation7 [shape = 's32[2]{0}', space=sflag, size = 0x8, scoped, tag = 'scoped memory for tpu_custom_call.1']
    #allocation8 [shape = 'u8[1048576]{0}', space=vmem, size = 0x100000, scoped, tag = 'input window, operand 2']
    #allocation9 [shape = 'u8[4096]{0}', space=vmem, size = 0x1000, scoped, tag = 'input window, operand 3']
    #allocation10 [shape = 's32[2]{0}', space=sflag, size = 0x8, scoped, tag = 'scoped memory for tpu_custom_call.1']
    #allocation11 [shape = 'u8[8192]{0}', space=vmem, size = 0x2000, scoped, tag = 'output window, operand 0']
    %9 = vsyncpa [#allocation4], 0
    %10 = vsyncpa [#allocation7], 0
    %s11 = scalar_lea.sflag [#allocation7], 1
    %12 = vsyncpa %s11, 0
    %13 = vsyncpa [#allocation10], 0
    %s14 = scalar_lea.sflag [#allocation10], 1
    %15 = vsyncpa %s14, 0
    %16 = vsyncpa [#allocation5], 0
    %s17 = scalar_lea.sflag [#allocation5], 1
    %18 = vsyncpa %s17, 0
    loop: start=0, step=1, limit=5
    $region2: #{tpu_custom_call.1} parent=1 // loop_pre_header
      _
    $region3: #{tpu_custom_call.1} parent=1 // loop_header
      %s20 = sphi 0, %s24
      %p21 = scmp.ge.s32.totalorder %s20, 5
      %s28 = sphi 0, %s28
      %s30 = sphi 0, %s28
      %s31 = sphi 0, %s30
      %s45 = sphi 0, %s31
      %s51 = sphi 0, %s53
      %s54 = sphi 0, %s51
      %s55 = sphi 0, %s54
      %s71 = sphi 0, %s55
      %s77 = sphi 0, %s79
      %s80 = sphi 0, %s77
      %s81 = sphi 0, %s80
      %s97 = sphi 0, %s81
      %s103 = sphi 0, %s105
      %s106 = sphi 0, %s103
      %s107 = sphi 0, %s106
      %s123 = sphi 0, %s107
      %s129 = sphi 0, %s131
      %s132 = sphi 0, %s129
      %s133 = sphi 0, %s132
      %s149 = sphi 0, %s133
    $region4: #{tpu_custom_call.1} parent=1 // loop_header_branch
      %23 = sbr.rel (%p21) target = $region8
    $region5: #{tpu_custom_call.1} parent=1 // loop_body
      %s25 = ssub.s32 %s20, 1
      %s26 = ssub.s32 %s20, 2
      %s27 = sadd.s32 %s20, 1
      %s29 = sadd.s32 %s28, 1
      %p32 = scmp.eq.s32.totalorder %s20, 2
      %p33 = scmp.ne.s32.totalorder %s28, %s30
      %p34 = scmp.eq.s32.totalorder %s20, 0
      %p35 = por %p33, %p34
      %p36 = scmp.ne.s32.totalorder %s28, %s30
      %p37 = scmp.eq.s32.totalorder %s25, 2
      %p38 = por %p36, %p37
      %p39 = scmp.ne.s32.totalorder %s30, %s31
      %p40 = scmp.eq.s32.totalorder %s25, 0
      %p41 = por %p39, %p40
      %p42 = scmp.ne.s32.totalorder %s30, %s31
      %p43 = scmp.eq.s32.totalorder %s26, 2
      %p44 = por %p42, %p43
      %p46 = scmp.ne.s32.totalorder %s31, %s45
      %p47 = scmp.eq.s32.totalorder %s26, 0
      %p48 = por %p46, %p47
      %s49 = ssub.s32 %s20, %s27
      %p50 = scmp.eq.s32.totalorder %s49, 0
      %s52 = sadd.s32 %s51, 1
      %s53 = scalar_select %p50, %s51, %s52
      %p56 = pneg %p50
      %p57 = scmp.eq.s32.totalorder %s20, 2
      %p58 = por %p56, %p57
      %p59 = scmp.ne.s32.totalorder %s51, %s54
      %p60 = scmp.eq.s32.totalorder %s20, 0
      %p61 = por %p59, %p60
      %p62 = scmp.ne.s32.totalorder %s51, %s54
      %p63 = scmp.eq.s32.totalorder %s25, 2
      %p64 = por %p62, %p63
      %p65 = scmp.ne.s32.totalorder %s54, %s55
      %p66 = scmp.eq.s32.totalorder %s25, 0
      %p67 = por %p65, %p66
      %p68 = scmp.ne.s32.totalorder %s54, %s55
      %p69 = scmp.eq.s32.totalorder %s26, 2
      %p70 = por %p68, %p69
      %p72 = scmp.ne.s32.totalorder %s55, %s71
      %p73 = scmp.eq.s32.totalorder %s26, 0
      %p74 = por %p72, %p73
      %s75 = ssub.s32 %s20, %s27
      %p76 = scmp.eq.s32.totalorder %s75, 0
      %s78 = sadd.s32 %s77, 1
      %s79 = scalar_select %p76, %s77, %s78
      %p82 = pneg %p76
      %p83 = scmp.eq.s32.totalorder %s20, 2
      %p84 = por %p82, %p83
      %p85 = scmp.ne.s32.totalorder %s77, %s80
      %p86 = scmp.eq.s32.totalorder %s20, 0
      %p87 = por %p85, %p86
      %p88 = scmp.ne.s32.totalorder %s77, %s80
      %p89 = scmp.eq.s32.totalorder %s25, 2
      %p90 = por %p88, %p89
      %p91 = scmp.ne.s32.totalorder %s80, %s81
      %p92 = scmp.eq.s32.totalorder %s25, 0
      %p93 = por %p91, %p92
      %p94 = scmp.ne.s32.totalorder %s80, %s81
      %p95 = scmp.eq.s32.totalorder %s26, 2
      %p96 = por %p94, %p95
      %p98 = scmp.ne.s32.totalorder %s81, %s97
      %p99 = scmp.eq.s32.totalorder %s26, 0
      %p100 = por %p98, %p99
      %s101 = ssub.s32 %s20, %s27
      %p102 = scmp.eq.s32.totalorder %s101, 0
      %s104 = sadd.s32 %s103, 1
      %s105 = scalar_select %p102, %s103, %s104
      %p108 = pneg %p102
      %p109 = scmp.eq.s32.totalorder %s20, 2
      %p110 = por %p108, %p109
      %p111 = scmp.ne.s32.totalorder %s103, %s106
      %p112 = scmp.eq.s32.totalorder %s20, 0
      %p113 = por %p111, %p112
      %p114 = scmp.ne.s32.totalorder %s103, %s106
      %p115 = scmp.eq.s32.totalorder %s25, 2
      %p116 = por %p114, %p115
      %p117 = scmp.ne.s32.totalorder %s106, %s107
      %p118 = scmp.eq.s32.totalorder %s25, 0
      %p119 = por %p117, %p118
      %p120 = scmp.ne.s32.totalorder %s106, %s107
      %p121 = scmp.eq.s32.totalorder %s26, 2
      %p122 = por %p120, %p121
      %p124 = scmp.ne.s32.totalorder %s107, %s123
      %p125 = scmp.eq.s32.totalorder %s26, 0
      %p126 = por %p124, %p125
      %s127 = ssub.s32 %s20, %s27
      %p128 = scmp.eq.s32.totalorder %s127, 0
      %s130 = sadd.s32 %s129, 1
      %s131 = scalar_select %p128, %s129, %s130
      %p134 = pneg %p128
      %p135 = scmp.eq.s32.totalorder %s20, 2
      %p136 = por %p134, %p135
      %p137 = scmp.ne.s32.totalorder %s129, %s132
      %p138 = scmp.eq.s32.totalorder %s20, 0
      %p139 = por %p137, %p138
      %p140 = scmp.ne.s32.totalorder %s129, %s132
      %p141 = scmp.eq.s32.totalorder %s25, 2
      %p142 = por %p140, %p141
      %p143 = scmp.ne.s32.totalorder %s132, %s133
      %p144 = scmp.eq.s32.totalorder %s25, 0
      %p145 = por %p143, %p144
      %p146 = scmp.ne.s32.totalorder %s132, %s133
      %p147 = scmp.eq.s32.totalorder %s26, 2
      %p148 = por %p146, %p147
      %p150 = scmp.ne.s32.totalorder %s133, %s149
      %p151 = scmp.eq.s32.totalorder %s26, 0
      %p152 = por %p150, %p151
      %p153 = scmp.le.s32.totalorder 1, %s20
      %p154 = scmp.lt.s32.totalorder %s20, 4
      %p155 = pnand %p153, %p154
      %p156 = pneg %p155
      // Predicated region
      $region9: #{tpu_custom_call.1} parent=5 // pred_check
        _
      $region10: #{tpu_custom_call.1} parent=5 // pred_check_branch
        %158 = sbr.rel (%p155) target = $region12
      $region11: #{tpu_custom_call.1} parent=5 // pred_region
        %s159 = ssub.s32 %s20, 1
        // Predicated region
        $region13: #{tpu_custom_call.1} parent=11 // pred_check
          %p160 = pneg %p41
        $region14: #{tpu_custom_call.1} parent=11 // pred_check_branch
          %162 = sbr.rel (%p160) target = $region16
        $region15: #{tpu_custom_call.1} parent=11 // pred_region
          %s164 = ssub.s32 128, 128
          %165 = vsyncadd [#allocation4], %s164
          %s167 = sshll.u32 [#allocation3], 4
          %s168 = int_to_ptr.vmem [resolvable:$true] %s167
          %170 = dma.hbm_to_vmem [thread:$0]  %s0, 128, %s168, [#allocation4]
        $region16: #{tpu_custom_call.1} parent=11 // pred_fallthru
          _
      $region12: #{tpu_custom_call.1} parent=5 // pred_fallthru
        _
      %p171 = scmp.lt.s32.totalorder %s20, 3
      // Predicated region
      $region17: #{tpu_custom_call.1} parent=5 // pred_check
        %p172 = pneg %p171
      $region18: #{tpu_custom_call.1} parent=5 // pred_check_branch
        %174 = sbr.rel (%p172) target = $region20
      $region19: #{tpu_custom_call.1} parent=5 // pred_region
        // Predicated region
        $region21: #{tpu_custom_call.1} parent=19 // pred_check
          %p175 = pneg %p61
        $region22: #{tpu_custom_call.1} parent=19 // pred_check_branch
          %177 = sbr.rel (%p175) target = $region24
        $region23: #{tpu_custom_call.1} parent=19 // pred_region
          %s178 = sand.u32 %s20, 1
          %s179 = scalar_lea.sflag [#allocation7], %s178
          %s180 = sand.u32 %s51, 1
          %s181 = smul.addr %s180, 8
          %s182 = scalar_lea.vmem [#allocation6], %s181
          %s184 = ssub.s32 128, 128
          %185 = vsyncadd %s179, %s184
          %s186 = smul.addr %s20, 128
          %s187 = scalar_lea.hbm %s1, %s186
          %s189 = sshll.u32 %s182, 4
          %s190 = int_to_ptr.vmem [resolvable:$true] %s189
          %192 = dma.hbm_to_vmem [thread:$0]  %s187, 128, %s190, %s179
        $region24: #{tpu_custom_call.1} parent=19 // pred_fallthru
          _
        // Predicated region
        $region25: #{tpu_custom_call.1} parent=19 // pred_check
          %p193 = pneg %p87
        $region26: #{tpu_custom_call.1} parent=19 // pred_check_branch
          %195 = sbr.rel (%p193) target = $region28
        $region27: #{tpu_custom_call.1} parent=19 // pred_region
          %s196 = sand.u32 %s20, 1
          %s197 = scalar_lea.sflag [#allocation7], %s196
          %s198 = sand.u32 %s77, 1
          %s199 = smul.addr %s198, 1024
          %s200 = scalar_lea.vmem [#allocation8], %s199
          %s202 = ssub.s32 16384, 16384
          %203 = vsyncadd %s197, %s202
          %s204 = smul.addr %s20, 128
          %s205 = smul.addr %s204, 128
          %s206 = scalar_lea.hbm %s2, %s205
          %s207 = sshll.u32 %s200, 4
          %s208 = int_to_ptr.vmem [resolvable:$true] %s207
          %213 = dma.hbm_to_vmem [thread:$0]  %s206, 16384, %s208, %s197, 512, 512, 32
        $region28: #{tpu_custom_call.1} parent=19 // pred_fallthru
          _
        // Predicated region
        $region29: #{tpu_custom_call.1} parent=19 // pred_check
          %p214 = pneg %p113
        $region30: #{tpu_custom_call.1} parent=19 // pred_check_branch
          %216 = sbr.rel (%p214) target = $region32
        $region31: #{tpu_custom_call.1} parent=19 // pred_region
          %s217 = sand.u32 %s103, 1
          %s218 = scalar_lea.sflag [#allocation10], %s217
          %s219 = sand.u32 %s103, 1
          %s220 = smul.addr %s219, 4
          %s221 = scalar_lea.vmem [#allocation9], %s220
          %s223 = ssub.s32 64, 64
          %224 = vsyncadd %s218, %s223
          %s225 = smul.addr %s20, 4
          %s226 = smul.addr %s225, 16
          %s227 = scalar_lea.hbm %s3, %s226
          %s229 = sshll.u32 %s221, 4
          %s230 = int_to_ptr.vmem [resolvable:$true] %s229
          %232 = dma.hbm_to_vmem [thread:$0]  %s227, 64, %s230, %s218
        $region32: #{tpu_custom_call.1} parent=19 // pred_fallthru
          _
      $region20: #{tpu_custom_call.1} parent=5 // pred_fallthru
        _
      %p233 = scmp.le.s32.totalorder 1, %s20
      %p234 = scmp.lt.s32.totalorder %s20, 4
      %p235 = pnand %p233, %p234
      %p236 = pneg %p235
      // Predicated region
      $region33: #{tpu_custom_call.1} parent=5 // pred_check
        _
      $region34: #{tpu_custom_call.1} parent=5 // pred_check_branch
        %238 = sbr.rel (%p235) target = $region36
      $region35: #{tpu_custom_call.1} parent=5 // pred_region
        %s239 = ssub.s32 %s20, 1
        // Predicated region
        $region37: #{tpu_custom_call.1} parent=35 // pred_check
          %p240 = pneg %p41
        $region38: #{tpu_custom_call.1} parent=35 // pred_check_branch
          %242 = sbr.rel (%p240) target = $region40
        $region39: #{tpu_custom_call.1} parent=35 // pred_region
          %243 = dma.done [#allocation4], 128
        $region40: #{tpu_custom_call.1} parent=35 // pred_fallthru
          _
        %s244 = sand.u32 %s25, 1
        %s245 = scalar_lea.sflag [#allocation7], %s244
        %s246 = sand.u32 %s54, 1
        %s247 = smul.addr %s246, 8
        %s248 = scalar_lea.vmem [#allocation6], %s247
        // Predicated region
        $region41: #{tpu_custom_call.1} parent=35 // pred_check
          %p249 = pneg %p67
        $region42: #{tpu_custom_call.1} parent=35 // pred_check_branch
          %251 = sbr.rel (%p249) target = $region44
        $region43: #{tpu_custom_call.1} parent=35 // pred_region
          %252 = dma.done %s245, 128
        $region44: #{tpu_custom_call.1} parent=35 // pred_fallthru
          _
        %s253 = sand.u32 %s25, 1
        %s254 = scalar_lea.sflag [#allocation7], %s253
        %s255 = sand.u32 %s80, 1
        %s256 = smul.addr %s255, 1024
        %s257 = scalar_lea.vmem [#allocation8], %s256
        // Predicated region
        $region45: #{tpu_custom_call.1} parent=35 // pred_check
          %p258 = pneg %p93
        $region46: #{tpu_custom_call.1} parent=35 // pred_check_branch
          %260 = sbr.rel (%p258) target = $region48
        $region47: #{tpu_custom_call.1} parent=35 // pred_region
          %261 = dma.done %s254, 16384
        $region48: #{tpu_custom_call.1} parent=35 // pred_fallthru
          _
        %s262 = sand.u32 %s106, 1
        %s263 = scalar_lea.sflag [#allocation10], %s262
        %s264 = sand.u32 %s106, 1
        %s265 = smul.addr %s264, 4
        %s266 = scalar_lea.vmem [#allocation9], %s265
        // Predicated region
        $region49: #{tpu_custom_call.1} parent=35 // pred_check
          %p267 = pneg %p119
        $region50: #{tpu_custom_call.1} parent=35 // pred_check_branch
          %269 = sbr.rel (%p267) target = $region52
        $region51: #{tpu_custom_call.1} parent=35 // pred_region
          %270 = dma.done %s263, 64
        $region52: #{tpu_custom_call.1} parent=35 // pred_fallthru
          _
        %p271 = pneg %p41
        %p272 = pneg %p38
        %s273 = sand.u32 %s25, 1
        %s274 = scalar_lea.sflag [#allocation7], %s273
        %s275 = sand.u32 %s54, 1
        %s276 = smul.addr %s275, 8
        %s277 = scalar_lea.vmem [#allocation6], %s276
        %p278 = pneg %p67
        %p279 = pneg %p64
        %s280 = sand.u32 %s25, 1
        %s281 = scalar_lea.sflag [#allocation7], %s280
        %s282 = sand.u32 %s80, 1
        %s283 = smul.addr %s282, 1024
        %s284 = scalar_lea.vmem [#allocation8], %s283
        %p285 = pneg %p93
        %p286 = pneg %p90
        %s287 = sand.u32 %s106, 1
        %s288 = scalar_lea.sflag [#allocation10], %s287
        %s289 = sand.u32 %s106, 1
        %s290 = smul.addr %s289, 4
        %s291 = scalar_lea.vmem [#allocation9], %s290
        %p292 = pneg %p119
        %p293 = pneg %p116
        %p294 = pneg %p145
        %p295 = pneg %p142
        %s296 = sand.u32 %s132, 1
        %s297 = scalar_lea.sflag [#allocation5], %s296
        %s298 = sand.u32 %s132, 1
        %s299 = smul.addr %s298, 8
        %s300 = scalar_lea.vmem [#allocation11], %s299
        %p301 = scmp.eq.s32.totalorder %s25, 0
        // Predicated region
        $region53: #{tpu_custom_call.1} parent=35 // pred_check
          %p302 = pneg %p301
        $region54: #{tpu_custom_call.1} parent=35 // pred_check_branch
          %304 = sbr.rel (%p302) target = $region56
        $region55: #{tpu_custom_call.1} parent=35 // pred_region
          %v305 = vld [vmem:[#allocation3] sm:$0xff]
          %306 = vst [vmem:[#allocation2] sm:$0xff] %v305
        $region56: #{tpu_custom_call.1} parent=35 // pred_fallthru
          _
        %v307 = vld [vmem:[%s248] sm:$0xff]
        %308 = vst [vmem:[#allocation2 + $0x8] sm:$0xff] %v307
        %v309 = vld [vmem:[#allocation2] sm:$0xff]
        %v310 = vld [vmem:[#allocation2 + $0x8] sm:$0xff]
        %v311 = vld [vmem:[%s257] sm:$0xff]
        %v312 = vld [vmem:[%s257 + $0x8] sm:$0xff]
        %v313 = vld [vmem:[%s257 + $0x10] sm:$0xff]
        %v314 = vld [vmem:[%s257 + $0x18] sm:$0xff]
        %v315 = vld [vmem:[%s257 + $0x20] sm:$0xff]
        %v316 = vld [vmem:[%s257 + $0x28] sm:$0xff]
        %v317 = vld [vmem:[%s257 + $0x30] sm:$0xff]
        %v318 = vld [vmem:[%s257 + $0x38] sm:$0xff]
        %v319 = vld [vmem:[%s257 + $0x40] sm:$0xff]
        %v320 = vld [vmem:[%s257 + $0x48] sm:$0xff]
        %v321 = vld [vmem:[%s257 + $0x50] sm:$0xff]
        %v322 = vld [vmem:[%s257 + $0x58] sm:$0xff]
        %v323 = vld [vmem:[%s257 + $0x60] sm:$0xff]
        %v324 = vld [vmem:[%s257 + $0x68] sm:$0xff]
        %v325 = vld [vmem:[%s257 + $0x70] sm:$0xff]
        %v326 = vld [vmem:[%s257 + $0x78] sm:$0xff]
        %v327 = vld [vmem:[%s257 + $0x80] sm:$0xff]
        %v328 = vld [vmem:[%s257 + $0x88] sm:$0xff]
        %v329 = vld [vmem:[%s257 + $0x90] sm:$0xff]
        %v330 = vld [vmem:[%s257 + $0x98] sm:$0xff]
        %v331 = vld [vmem:[%s257 + $0xa0] sm:$0xff]
        %v332 = vld [vmem:[%s257 + $0xa8] sm:$0xff]
        %v333 = vld [vmem:[%s257 + $0xb0] sm:$0xff]
        %v334 = vld [vmem:[%s257 + $0xb8] sm:$0xff]
        %v335 = vld [vmem:[%s257 + $0xc0] sm:$0xff]
        %v336 = vld [vmem:[%s257 + $0xc8] sm:$0xff]
        %v337 = vld [vmem:[%s257 + $0xd0] sm:$0xff]
        %v338 = vld [vmem:[%s257 + $0xd8] sm:$0xff]
        %v339 = vld [vmem:[%s257 + $0xe0] sm:$0xff]
        %v340 = vld [vmem:[%s257 + $0xe8] sm:$0xff]
        %v341 = vld [vmem:[%s257 + $0xf0] sm:$0xff]
        %v342 = vld [vmem:[%s257 + $0xf8] sm:$0xff]
        %v343 = vld [vmem:[%s257 + $0x100] sm:$0xff]
        %v344 = vld [vmem:[%s257 + $0x108] sm:$0xff]
        %v345 = vld [vmem:[%s257 + $0x110] sm:$0xff]
        %v346 = vld [vmem:[%s257 + $0x118] sm:$0xff]
        %v347 = vld [vmem:[%s257 + $0x120] sm:$0xff]
        %v348 = vld [vmem:[%s257 + $0x128] sm:$0xff]
        %v349 = vld [vmem:[%s257 + $0x130] sm:$0xff]
        %v350 = vld [vmem:[%s257 + $0x138] sm:$0xff]
        %v351 = vld [vmem:[%s257 + $0x140] sm:$0xff]
        %v352 = vld [vmem:[%s257 + $0x148] sm:$0xff]
        %v353 = vld [vmem:[%s257 + $0x150] sm:$0xff]
        %v354 = vld [vmem:[%s257 + $0x158] sm:$0xff]
        %v355 = vld [vmem:[%s257 + $0x160] sm:$0xff]
        %v356 = vld [vmem:[%s257 + $0x168] sm:$0xff]
        %v357 = vld [vmem:[%s257 + $0x170] sm:$0xff]
        %v358 = vld [vmem:[%s257 + $0x178] sm:$0xff]
        %v359 = vld [vmem:[%s257 + $0x180] sm:$0xff]
        %v360 = vld [vmem:[%s257 + $0x188] sm:$0xff]
        %v361 = vld [vmem:[%s257 + $0x190] sm:$0xff]
        %v362 = vld [vmem:[%s257 + $0x198] sm:$0xff]
        %v363 = vld [vmem:[%s257 + $0x1a0] sm:$0xff]
        %v364 = vld [vmem:[%s257 + $0x1a8] sm:$0xff]
        %v365 = vld [vmem:[%s257 + $0x1b0] sm:$0xff]
        %v366 = vld [vmem:[%s257 + $0x1b8] sm:$0xff]
        %v367 = vld [vmem:[%s257 + $0x1c0] sm:$0xff]
        %v368 = vld [vmem:[%s257 + $0x1c8] sm:$0xff]
        %v369 = vld [vmem:[%s257 + $0x1d0] sm:$0xff]
        %v370 = vld [vmem:[%s257 + $0x1d8] sm:$0xff]
        %v371 = vld [vmem:[%s257 + $0x1e0] sm:$0xff]
        %v372 = vld [vmem:[%s257 + $0x1e8] sm:$0xff]
        %v373 = vld [vmem:[%s257 + $0x1f0] sm:$0xff]
        %v374 = vld [vmem:[%s257 + $0x1f8] sm:$0xff]
        %v375 = vld [vmem:[%s257 + $0x200] sm:$0xff]
        %v376 = vld [vmem:[%s257 + $0x208] sm:$0xff]
        %v377 = vld [vmem:[%s257 + $0x210] sm:$0xff]
        %v378 = vld [vmem:[%s257 + $0x218] sm:$0xff]
        %v379 = vld [vmem:[%s257 + $0x220] sm:$0xff]
        %v380 = vld [vmem:[%s257 + $0x228] sm:$0xff]
        %v381 = vld [vmem:[%s257 + $0x230] sm:$0xff]
        %v382 = vld [vmem:[%s257 + $0x238] sm:$0xff]
        %v383 = vld [vmem:[%s257 + $0x240] sm:$0xff]
        %v384 = vld [vmem:[%s257 + $0x248] sm:$0xff]
        %v385 = vld [vmem:[%s257 + $0x250] sm:$0xff]
        %v386 = vld [vmem:[%s257 + $0x258] sm:$0xff]
        %v387 = vld [vmem:[%s257 + $0x260] sm:$0xff]
        %v388 = vld [vmem:[%s257 + $0x268] sm:$0xff]
        %v389 = vld [vmem:[%s257 + $0x270] sm:$0xff]
        %v390 = vld [vmem:[%s257 + $0x278] sm:$0xff]
        %v391 = vld [vmem:[%s257 + $0x280] sm:$0xff]
        %v392 = vld [vmem:[%s257 + $0x288] sm:$0xff]
        %v393 = vld [vmem:[%s257 + $0x290] sm:$0xff]
        %v394 = vld [vmem:[%s257 + $0x298] sm:$0xff]
        %v395 = vld [vmem:[%s257 + $0x2a0] sm:$0xff]
        %v396 = vld [vmem:[%s257 + $0x2a8] sm:$0xff]
        %v397 = vld [vmem:[%s257 + $0x2b0] sm:$0xff]
        %v398 = vld [vmem:[%s257 + $0x2b8] sm:$0xff]
        %v399 = vld [vmem:[%s257 + $0x2c0] sm:$0xff]
        %v400 = vld [vmem:[%s257 + $0x2c8] sm:$0xff]
        %v401 = vld [vmem:[%s257 + $0x2d0] sm:$0xff]
        %v402 = vld [vmem:[%s257 + $0x2d8] sm:$0xff]
        %v403 = vld [vmem:[%s257 + $0x2e0] sm:$0xff]
        %v404 = vld [vmem:[%s257 + $0x2e8] sm:$0xff]
        %v405 = vld [vmem:[%s257 + $0x2f0] sm:$0xff]
        %v406 = vld [vmem:[%s257 + $0x2f8] sm:$0xff]
        %v407 = vld [vmem:[%s257 + $0x300] sm:$0xff]
        %v408 = vld [vmem:[%s257 + $0x308] sm:$0xff]
        %v409 = vld [vmem:[%s257 + $0x310] sm:$0xff]
        %v410 = vld [vmem:[%s257 + $0x318] sm:$0xff]
        %v411 = vld [vmem:[%s257 + $0x320] sm:$0xff]
        %v412 = vld [vmem:[%s257 + $0x328] sm:$0xff]
        %v413 = vld [vmem:[%s257 + $0x330] sm:$0xff]
        %v414 = vld [vmem:[%s257 + $0x338] sm:$0xff]
        %v415 = vld [vmem:[%s257 + $0x340] sm:$0xff]
        %v416 = vld [vmem:[%s257 + $0x348] sm:$0xff]
        %v417 = vld [vmem:[%s257 + $0x350] sm:$0xff]
        %v418 = vld [vmem:[%s257 + $0x358] sm:$0xff]
        %v419 = vld [vmem:[%s257 + $0x360] sm:$0xff]
        %v420 = vld [vmem:[%s257 + $0x368] sm:$0xff]
        %v421 = vld [vmem:[%s257 + $0x370] sm:$0xff]
        %v422 = vld [vmem:[%s257 + $0x378] sm:$0xff]
        %v423 = vld [vmem:[%s257 + $0x380] sm:$0xff]
        %v424 = vld [vmem:[%s257 + $0x388] sm:$0xff]
        %v425 = vld [vmem:[%s257 + $0x390] sm:$0xff]
        %v426 = vld [vmem:[%s257 + $0x398] sm:$0xff]
        %v427 = vld [vmem:[%s257 + $0x3a0] sm:$0xff]
        %v428 = vld [vmem:[%s257 + $0x3a8] sm:$0xff]
        %v429 = vld [vmem:[%s257 + $0x3b0] sm:$0xff]
        %v430 = vld [vmem:[%s257 + $0x3b8] sm:$0xff]
        %v431 = vld [vmem:[%s257 + $0x3c0] sm:$0xff]
        %v432 = vld [vmem:[%s257 + $0x3c8] sm:$0xff]
        %v433 = vld [vmem:[%s257 + $0x3d0] sm:$0xff]
        %v434 = vld [vmem:[%s257 + $0x3d8] sm:$0xff]
        %v435 = vld [vmem:[%s257 + $0x3e0] sm:$0xff]
        %v436 = vld [vmem:[%s257 + $0x3e8] sm:$0xff]
        %v437 = vld [vmem:[%s257 + $0x3f0] sm:$0xff]
        %v438 = vld [vmem:[%s257 + $0x3f8] sm:$0xff]
        %v439 = vld [vmem:[%s266] sm:$0xf]
        %v441 = vlaneseq
        %v442 = vshrl.u32 %v441, 7
        %v443 = vsub.s32 0, %v442
        %v444 = vrot.slane %v439, %v443
        %v445 = vlaneseq
        %v446 = vshrl.u32 %v445, 7
        %v447 = vsub.s32 1, %v446
        %v448 = vrot.slane %v439, %v447
        %v449 = vlaneseq
        %v450 = vshrl.u32 %v449, 7
        %v451 = vsub.s32 2, %v450
        %v452 = vrot.slane %v439, %v451
        %v453 = vlaneseq
        %v454 = vshrl.u32 %v453, 7
        %v455 = vsub.s32 3, %v454
        %v456 = vrot.slane %v439, %v455
        %461 = vmatprep.subr.mxu0 %v312
        %462 = vmatpush1.msra.mxu0 %v311
        %463 = vmatprep.subr.mxu0 %v316
        %464 = vmatpush1.msra.mxu0 %v315
        %465 = vmatprep.subr.mxu0 %v320
        %466 = vmatpush1.msra.mxu0 %v319
        %467 = vmatprep.subr.mxu0 %v324
        %468 = vmatpush1.msra.mxu0 %v323
        %469 = vmatprep.subr.mxu0 %v328
        %470 = vmatpush1.msra.mxu0 %v327
        %471 = vmatprep.subr.mxu0 %v332
        %472 = vmatpush1.msra.mxu0 %v331
        %473 = vmatprep.subr.mxu0 %v336
        %474 = vmatpush1.msra.mxu0 %v335
        %475 = vmatprep.subr.mxu0 %v340
        %476 = vmatpush1.msra.mxu0 %v339
        %477 = vmatprep.subr.mxu0 %v344
        %478 = vmatpush1.msra.mxu0 %v343
        %479 = vmatprep.subr.mxu0 %v348
        %480 = vmatpush1.msra.mxu0 %v347
        %481 = vmatprep.subr.mxu0 %v352
        %482 = vmatpush1.msra.mxu0 %v351
        %483 = vmatprep.subr.mxu0 %v356
        %484 = vmatpush1.msra.mxu0 %v355
        %485 = vmatprep.subr.mxu0 %v360
        %486 = vmatpush1.msra.mxu0 %v359
        %487 = vmatprep.subr.mxu0 %v364
        %488 = vmatpush1.msra.mxu0 %v363
        %489 = vmatprep.subr.mxu0 %v368
        %490 = vmatpush1.msra.mxu0 %v367
        %491 = vmatprep.subr.mxu0 %v372
        %492 = vmatpush1.msra.mxu0 %v371
        %493 = vmatprep.subr.mxu0 %v376
        %494 = vmatpush1.msra.mxu0 %v375
        %495 = vmatprep.subr.mxu0 %v380
        %496 = vmatpush1.msra.mxu0 %v379
        %497 = vmatprep.subr.mxu0 %v384
        %498 = vmatpush1.msra.mxu0 %v383
        %499 = vmatprep.subr.mxu0 %v388
        %500 = vmatpush1.msra.mxu0 %v387
        %501 = vmatprep.subr.mxu0 %v392
        %502 = vmatpush1.msra.mxu0 %v391
        %503 = vmatprep.subr.mxu0 %v396
        %504 = vmatpush1.msra.mxu0 %v395
        %505 = vmatprep.subr.mxu0 %v400
        %506 = vmatpush1.msra.mxu0 %v399
        %507 = vmatprep.subr.mxu0 %v404
        %508 = vmatpush1.msra.mxu0 %v403
        %509 = vmatprep.subr.mxu0 %v408
        %510 = vmatpush1.msra.mxu0 %v407
        %511 = vmatprep.subr.mxu0 %v412
        %512 = vmatpush1.msra.mxu0 %v411
        %513 = vmatprep.subr.mxu0 %v416
        %514 = vmatpush1.msra.mxu0 %v415
        %515 = vmatprep.subr.mxu0 %v420
        %516 = vmatpush1.msra.mxu0 %v419
        %517 = vmatprep.subr.mxu0 %v424
        %518 = vmatpush1.msra.mxu0 %v423
        %519 = vmatprep.subr.mxu0 %v428
        %520 = vmatpush1.msra.mxu0 %v427
        %521 = vmatprep.subr.mxu0 %v432
        %522 = vmatpush1.msra.mxu0 %v431
        %523 = vmatprep.subr.mxu0 %v436
        %524 = vmatpush1.msra.mxu0 %v435
        %525 = vmatprep.mubr.f32.mxu0 %v310
        %526 = vmatmul.mubr.f32.gmra.mrb[0].mxu0 %v309
        %v527 = vpop.f32.mrb[0].mxu0
        %v528 = vadd.f32 %v444, %v527
        %v529 = vpop.f32.mrb[0].mxu0
        %v530 = vadd.f32 %v448, %v529
        %531 = vdwg.mxu0
        %532 = vmatprep.subr.mxu0 %v314
        %533 = vmatpush1.msra.mxu0 %v313
        %534 = vmatprep.subr.mxu0 %v318
        %535 = vmatpush1.msra.mxu0 %v317
        %536 = vmatprep.subr.mxu0 %v322
        %537 = vmatpush1.msra.mxu0 %v321
        %538 = vmatprep.subr.mxu0 %v326
        %539 = vmatpush1.msra.mxu0 %v325
        %540 = vmatprep.subr.mxu0 %v330
        %541 = vmatpush1.msra.mxu0 %v329
        %542 = vmatprep.subr.mxu0 %v334
        %543 = vmatpush1.msra.mxu0 %v333
        %544 = vmatprep.subr.mxu0 %v338
        %545 = vmatpush1.msra.mxu0 %v337
        %546 = vmatprep.subr.mxu0 %v342
        %547 = vmatpush1.msra.mxu0 %v341
        %548 = vmatprep.subr.mxu0 %v346
        %549 = vmatpush1.msra.mxu0 %v345
        %550 = vmatprep.subr.mxu0 %v350
        %551 = vmatpush1.msra.mxu0 %v349
        %552 = vmatprep.subr.mxu0 %v354
        %553 = vmatpush1.msra.mxu0 %v353
        %554 = vmatprep.subr.mxu0 %v358
        %555 = vmatpush1.msra.mxu0 %v357
        %556 = vmatprep.subr.mxu0 %v362
        %557 = vmatpush1.msra.mxu0 %v361
        %558 = vmatprep.subr.mxu0 %v366
        %559 = vmatpush1.msra.mxu0 %v365
        %560 = vmatprep.subr.mxu0 %v370
        %561 = vmatpush1.msra.mxu0 %v369
        %562 = vmatprep.subr.mxu0 %v374
        %563 = vmatpush1.msra.mxu0 %v373
        %564 = vmatprep.subr.mxu0 %v378
        %565 = vmatpush1.msra.mxu0 %v377
        %566 = vmatprep.subr.mxu0 %v382
        %567 = vmatpush1.msra.mxu0 %v381
        %568 = vmatprep.subr.mxu0 %v386
        %569 = vmatpush1.msra.mxu0 %v385
        %570 = vmatprep.subr.mxu0 %v390
        %571 = vmatpush1.msra.mxu0 %v389
        %572 = vmatprep.subr.mxu0 %v394
        %573 = vmatpush1.msra.mxu0 %v393
        %574 = vmatprep.subr.mxu0 %v398
        %575 = vmatpush1.msra.mxu0 %v397
        %576 = vmatprep.subr.mxu0 %v402
        %577 = vmatpush1.msra.mxu0 %v401
        %578 = vmatprep.subr.mxu0 %v406
        %579 = vmatpush1.msra.mxu0 %v405
        %580 = vmatprep.subr.mxu0 %v410
        %581 = vmatpush1.msra.mxu0 %v409
        %582 = vmatprep.subr.mxu0 %v414
        %583 = vmatpush1.msra.mxu0 %v413
        %584 = vmatprep.subr.mxu0 %v418
        %585 = vmatpush1.msra.mxu0 %v417
        %586 = vmatprep.subr.mxu0 %v422
        %587 = vmatpush1.msra.mxu0 %v421
        %588 = vmatprep.subr.mxu0 %v426
        %589 = vmatpush1.msra.mxu0 %v425
        %590 = vmatprep.subr.mxu0 %v430
        %591 = vmatpush1.msra.mxu0 %v429
        %592 = vmatprep.subr.mxu0 %v434
        %593 = vmatpush1.msra.mxu0 %v433
        %594 = vmatprep.subr.mxu0 %v438
        %595 = vmatpush1.msra.mxu0 %v437
        %596 = vmatprep.mubr.f32.mxu0 %v310
        %597 = vmatmul.mubr.f32.gmra.mrb[0].mxu0 %v309
        %v598 = vpop.f32.mrb[0].mxu0
        %v599 = vadd.f32 %v452, %v598
        %v600 = vpop.f32.mrb[0].mxu0
        %v601 = vadd.f32 %v456, %v600
        %602 = vdwg.mxu0
        %v603 = vxor.u32 %v528, 2147483648
        %v604 = vmul.f32 %v603, 1.442695
        %v605 = vpow.pop %v604
        %v606 = vadd.f32 %v605, 1.0
        %v607 = vrcp.pop %v606
        %v608 = vmul.f32 1.0, %v607
        %v609 = vxor.u32 %v530, 2147483648
        %v610 = vmul.f32 %v609, 1.442695
        %v611 = vpow.pop %v610
        %v612 = vadd.f32 %v611, 1.0
        %v613 = vrcp.pop %v612
        %v614 = vmul.f32 1.0, %v613
        %v615 = vmul.f32 %v608, %v601
        %v616 = vadd.f32 %v599, %v615
        %v617 = vtanh.pop %v616
        %v618 = vsub.f32 1.0, %v614
        %v619 = vmul.f32 %v618, %v617
        %v620 = vmul.f32 %v614, %v307
        %v621 = vadd.f32 %v619, %v620
        %622 = vst [vmem:[%s300] sm:$0xff] %v621
        %623 = vst [vmem:[#allocation2] sm:$0xff] %v621
        %s624 = sand.u32 %s132, 1
        %s625 = scalar_lea.sflag [#allocation5], %s624
        %s626 = sand.u32 %s132, 1
        %s627 = smul.addr %s626, 8
        %s628 = scalar_lea.vmem [#allocation11], %s627
        // Predicated region
        $region57: #{tpu_custom_call.1} parent=35 // pred_check
          %p629 = pneg %p142
        $region58: #{tpu_custom_call.1} parent=35 // pred_check_branch
          %631 = sbr.rel (%p629) target = $region60
        $region59: #{tpu_custom_call.1} parent=35 // pred_region
          %s633 = ssub.s32 128, 128
          %634 = vsyncadd %s625, %s633
          %s635 = smul.addr %s25, 128
          %s636 = scalar_lea.hbm %s4, %s635
          %s638 = sshll.u32 %s628, 4
          %s639 = int_to_ptr.vmem [resolvable:$true] %s638
          %641 = dma.vmem_to_hbm [thread:$0]  %s639, 128, %s636, %s625
        $region60: #{tpu_custom_call.1} parent=35 // pred_fallthru
          _
      $region36: #{tpu_custom_call.1} parent=5 // pred_fallthru
        _
      %p642 = scmp.le.s32.totalorder 2, %s20
      // Predicated region
      $region61: #{tpu_custom_call.1} parent=5 // pred_check
        %p643 = pneg %p642
      $region62: #{tpu_custom_call.1} parent=5 // pred_check_branch
        %645 = sbr.rel (%p643) target = $region64
      $region63: #{tpu_custom_call.1} parent=5 // pred_region
        %s646 = ssub.s32 %s20, 2
        // Predicated region
        $region65: #{tpu_custom_call.1} parent=63 // pred_check
          %p647 = pneg %p148
        $region66: #{tpu_custom_call.1} parent=63 // pred_check_branch
          %649 = sbr.rel (%p647) target = $region68
        $region67: #{tpu_custom_call.1} parent=63 // pred_region
          %s650 = sand.u32 %s133, 1
          %s651 = scalar_lea.sflag [#allocation5], %s650
          %s652 = sand.u32 %s133, 1
          %s653 = smul.addr %s652, 8
          %s654 = scalar_lea.vmem [#allocation11], %s653
          %655 = dma.done %s651, 128
        $region68: #{tpu_custom_call.1} parent=63 // pred_fallthru
          _
      $region64: #{tpu_custom_call.1} parent=5 // pred_fallthru
        _
    $region6: #{tpu_custom_call.1} parent=1 // loop_footer
      %s24 = sadd.s32 1, %s20
    $region7: #{tpu_custom_call.1} parent=1 // loop_footer_branch
      %19 = sbr.rel target = $region3
    $region8: #{tpu_custom_call.1} parent=1 // loop_exit
      _
    %656 = vsyncpa [#allocation4], 1
    %s657 = scalar_lea.sflag [#allocation4], 1
    %658 = vsyncpa %s657, 1
    %659 = vsyncpa [#allocation7], 1
    %s660 = scalar_lea.sflag [#allocation7], 1
    %661 = vsyncpa %s660, 1
    %662 = vsyncpa [#allocation10], 1
    %s663 = scalar_lea.sflag [#allocation10], 1
    %664 = vsyncpa %s663, 1
    %665 = vsyncpa [#allocation5], 1
    %s666 = scalar_lea.sflag [#allocation5], 1
    %667 = vsyncpa %s666, 1

</llo_original>
